<compile_context>
chip_gen: v5e
topology: v5e:2x2
jax: 0.10.0
libtpu: 0.0.40
codegen_flags: <defaults>
</compile_context>

<pallas_src>
import functools

import jax
import jax.numpy as jnp
from jax.experimental import pallas as pl
from jax.experimental.pallas import tpu as pltpu

EMBED_DIM = 768
NUM_CLASSES = 36
NUM_HEADS = 4
PATCH = 4
K_RAW = 3 * PATCH * PATCH          # 48
K_PAD = 128                        # pad contraction dim to a full 128 lanes
PACKED_OUT = NUM_HEADS * NUM_CLASSES   # 144
HEAD_PAD = 256                     # lane-dense packed head output (144 -> 256)


# ----------------------------------------------------------------------------
# Fused kernel: patch-embed matmul + sequence mean + packed digit heads
# ----------------------------------------------------------------------------
def _fused_kernel(p_ref, wpe_ref, wh_ref, bpe_ref, bh_ref, o_ref, acc_ref, *,
                  inv_l):
    # p_ref:   (1, TL, 128)  bf16   patches row tile (zero-padded rows/cols)
    # wpe_ref: (128, 768)    bf16   patch-embed weight (zero-padded K)
    # wh_ref:  (768, 256)    bf16   4 digit heads packed + zero-padded columns
    # bpe_ref: (1, 768)      f32
    # bh_ref:  (1, 256)      f32
    # o_ref:   (1, 1, 256)   f32    packed logits for this batch element
    # acc_ref: (1, 768)      f32    running token sum for this batch element
    li = pl.program_id(1)

    @pl.when(li == 0)
    def _init():
        acc_ref[...] = jnp.zeros_like(acc_ref)

    # (TL, 128) @ (128, 768) on the MXU, f32 accumulate.  Zero-padded rows and
    # zero-padded K columns contribute exactly 0 to the sum.
    tok = jnp.dot(p_ref[0], wpe_ref[...], preferred_element_type=jnp.float32)
    acc_ref[...] += jnp.sum(tok, axis=0, keepdims=True)

    @pl.when(li == pl.num_programs(1) - 1)
    def _final():
        # mean over the true L, then add the patch-embed bias once (exact,
        # since mean is linear and the backbone is identity).
        feat = acc_ref[...] * inv_l + bpe_ref[...]              # (1, 768) f32
        out = (jnp.dot(feat.astype(wh_ref.dtype), wh_ref[...],
                       preferred_element_type=jnp.float32)
               + bh_ref[...])                                   # (1, 256) f32
        o_ref[...] = out.reshape(o_ref.shape)


def _choose_row_tile(l):
    if l >= 512:
        return 512
    return max(8, ((l + 7) // 8) * 8)


def fused_forward(patches_pad, w_pe_pad, w_heads_pad, b_pe, b_heads_pad, *,
                  l_true, tl):
    b, l_pad, _ = patches_pad.shape
    grid = (b, l_pad // tl)
    kernel = functools.partial(_fused_kernel, inv_l=1.0 / float(l_true))
    return pl.pallas_call(
        kernel,
        out_shape=jax.ShapeDtypeStruct((b, 1, HEAD_PAD), jnp.float32),
        grid_spec=pltpu.PrefetchScalarGridSpec(
            num_scalar_prefetch=0,
            grid=grid,
            in_specs=[
                # patches: tiled on (batch, L); weights/biases stay resident.
                pl.BlockSpec((1, tl, K_PAD), lambda bi, li: (bi, li, 0)),
                pl.BlockSpec((K_PAD, EMBED_DIM), lambda bi, li: (0, 0)),
                pl.BlockSpec((EMBED_DIM, HEAD_PAD), lambda bi, li: (0, 0)),
                pl.BlockSpec((1, EMBED_DIM), lambda bi, li: (0, 0)),
                pl.BlockSpec((1, HEAD_PAD), lambda bi, li: (0, 0)),
            ],
            out_specs=pl.BlockSpec((1, 1, HEAD_PAD), lambda bi, li: (bi, 0, 0)),
            scratch_shapes=[pltpu.VMEM((1, EMBED_DIM), jnp.float32)],
        ),
        compiler_params=pltpu.CompilerParams(
            # batch axis -> megacore parallel (2 TCs on v7x); L axis is the
            # reduction -> arbitrary, kept last.
            dimension_semantics=("parallel", "arbitrary"),
            vmem_limit_bytes=32 * 1024 * 1024,
        ),
    )(patches_pad, w_pe_pad, w_heads_pad, b_pe, b_heads_pad)


# ----------------------------------------------------------------------------
# Parameters (deterministic, synthetic weights; mirror the PyTorch layout)
# ----------------------------------------------------------------------------
def init_params(key):
    keys = jax.random.split(key, 10)
    params = {
        # conv(3 -> 768, kernel 4x4, stride 4) flattened to (C*kh*kw, 768)
        "w_pe": jax.random.normal(keys[0], (K_RAW, EMBED_DIM), jnp.float32) * 0.02,
        "b_pe": jax.random.normal(keys[1], (EMBED_DIM,), jnp.float32) * 0.02,
    }
    for i in range(NUM_HEADS):
        params[f"w_digit{i + 1}"] = (
            jax.random.normal(keys[2 + 2 * i], (EMBED_DIM, NUM_CLASSES), jnp.float32) * 0.02)
        params[f"b_digit{i + 1}"] = (
            jax.random.normal(keys[3 + 2 * i], (NUM_CLASSES,), jnp.float32) * 0.02)
    return params


def extract_patches(x):
    # x: [B, 3, H, W] (NCHW) -> [B, L, 3*4*4], flattened as C*kh*kw
    b, c, h, w = x.shape
    x = x.reshape(b, c, h // PATCH, PATCH, w // PATCH, PATCH)
    x = x.transpose(0, 2, 4, 1, 3, 5)                 # [B, H/4, W/4, C, 4, 4]
    return x.reshape(b, (h // PATCH) * (w // PATCH), c * PATCH * PATCH)


@jax.jit
def model3_forward(params, x):
    patches = extract_patches(x)                       # [B, L, 48] f32
    l = patches.shape[1]
    tl = _choose_row_tile(l)
    l_pad = ((l + tl - 1) // tl) * tl

    # Zero-pad rows (remainder L tile) and the contraction dim, cast to bf16.
    patches = jnp.pad(patches, ((0, 0), (0, l_pad - l), (0, K_PAD - K_RAW)))
    patches = patches.astype(jnp.bfloat16)

    w_pe = jnp.pad(params["w_pe"], ((0, K_PAD - K_RAW), (0, 0))).astype(jnp.bfloat16)
    b_pe = params["b_pe"].reshape(1, EMBED_DIM)

    # Pack the 4 heads column-wise and zero-pad to a lane-dense 256-wide slab.
    w_heads = jnp.concatenate(
        [params[f"w_digit{i}"] for i in range(1, NUM_HEADS + 1)], axis=1)
    b_heads = jnp.concatenate(
        [params[f"b_digit{i}"] for i in range(1, NUM_HEADS + 1)], axis=0).reshape(1, -1)
    w_heads = jnp.pad(w_heads, ((0, 0), (0, HEAD_PAD - PACKED_OUT))).astype(jnp.bfloat16)
    b_heads = jnp.pad(b_heads, ((0, 0), (0, HEAD_PAD - PACKED_OUT)))

    packed = fused_forward(patches, w_pe, w_heads, b_pe, b_heads,
                           l_true=l, tl=tl)            # [B, 1, 256]
    packed = packed[:, 0, :PACKED_OUT]                 # [B, 144]
    out1 = packed[:, 0 * NUM_CLASSES:1 * NUM_CLASSES]
    out2 = packed[:, 1 * NUM_CLASSES:2 * NUM_CLASSES]
    out3 = packed[:, 2 * NUM_CLASSES:3 * NUM_CLASSES]
    out4 = packed[:, 3 * NUM_CLASSES:4 * NUM_CLASSES]
    return out1, out2, out3, out4


if __name__ == "__main__":
    key = jax.random.PRNGKey(0)
    k_params, k_x = jax.random.split(key)
    params = init_params(k_params)
    # small image input consistent with the NCHW conv-style front end
    x = jax.random.normal(k_x, (2, 3, 32, 32), jnp.float32)

    outs = model3_forward(params, x)
    jax.block_until_ready(outs)
    out1, out2, out3, out4 = outs
    assert out1.shape == (2, NUM_CLASSES) and out4.shape == (2, NUM_CLASSES)

    # reference check in plain JAX (f32)
    patches = extract_patches(x)
    tok = patches @ params["w_pe"] + params["b_pe"]    # [B, L, 768]
    feat = tok.mean(axis=1)                            # [B, 768]
    refs = [feat @ params[f"w_digit{i}"] + params[f"b_digit{i}"]
            for i in range(1, NUM_HEADS + 1)]
    for got, ref in zip(outs, refs):
        assert jnp.allclose(got, ref, atol=1e-2, rtol=1e-2), (
            float(jnp.max(jnp.abs(got - ref))))

    print("KERNEL_OK")
</pallas_src>

<mosaic_0001>
module attributes {stable_mosaic.version = 11 : i64} {
  func.func @_fused_kernel(%arg0: i32, %arg1: i32, %arg2: memref<1x64x128xbf16, #tpu.memory_space<vmem>>, %arg3: memref<128x768xbf16, #tpu.memory_space<vmem>>, %arg4: memref<768x256xbf16, #tpu.memory_space<vmem>>, %arg5: memref<1x768xf32, #tpu.memory_space<vmem>>, %arg6: memref<1x256xf32, #tpu.memory_space<vmem>>, %arg7: memref<1x1x256xf32, #tpu.memory_space<vmem>>, %arg8: memref<1x768xf32, #tpu.memory_space<vmem>>) attributes {dimension_semantics = [#tpu.dimension_semantics<parallel>, #tpu.dimension_semantics<arbitrary>], iteration_bounds = array<i64: 2, 1>, scalar_prefetch = 0 : i64, scratch_operands = 1 : i64, tpu.core_type = #tpu.core_type<tc>, window_params = [{transform_indices = @transform_0, window_bounds = array<i64: 1, 64, 128>}, {pipeline_mode = #tpu.pipeline_mode<synchronous>, transform_indices = @transform_1, window_bounds = array<i64: 128, 768>}, {pipeline_mode = #tpu.pipeline_mode<synchronous>, transform_indices = @transform_2, window_bounds = array<i64: 768, 256>}, {pipeline_mode = #tpu.pipeline_mode<synchronous>, transform_indices = @transform_3, window_bounds = array<i64: 1, 768>}, {pipeline_mode = #tpu.pipeline_mode<synchronous>, transform_indices = @transform_4, window_bounds = array<i64: 1, 256>}, {transform_indices = @transform_5, window_bounds = array<i64: 1, 1, 256>}]} {
    %c0_i32 = arith.constant 0 : i32
    %0 = arith.cmpi eq, %arg1, %c0_i32 : i32
    %1 = arith.extui %0 : i1 to i32
    %c0_i32_0 = arith.constant 0 : i32
    %2 = arith.cmpi ne, %1, %c0_i32_0 : i32
    scf.if %2 {
      %cst_12 = arith.constant 0.000000e+00 : f32
      %15 = vector.broadcast %cst_12 : f32 to vector<1x768xf32>
      %c0_13 = arith.constant 0 : index
      %c0_14 = arith.constant 0 : index
      %16 = vector.load %arg8[%c0_13, %c0_14] : memref<1x768xf32, #tpu.memory_space<vmem>>, vector<1x768xf32>
      tpu.vector_store %arg8[%c0_13, %c0_14], %15 {strides = array<i32>} : memref<1x768xf32, #tpu.memory_space<vmem>>, vector<1x768xf32>,
    } else {
    }
    %c0 = arith.constant 0 : index
    %c0_1 = arith.constant 0 : index
    %c0_2 = arith.constant 0 : index
    %3 = vector.load %arg2[%c0, %c0_1, %c0_2] : memref<1x64x128xbf16, #tpu.memory_space<vmem>>, vector<1x64x128xbf16>
    %4 = vector.shape_cast %3 : vector<1x64x128xbf16> to vector<64x128xbf16>
    %c0_3 = arith.constant 0 : index
    %c0_4 = arith.constant 0 : index
    %5 = vector.load %arg3[%c0_3, %c0_4] : memref<128x768xbf16, #tpu.memory_space<vmem>>, vector<128x768xbf16>
    %cst = arith.constant dense<0.000000e+00> : vector<64x768xf32>
    %6 = tpu.matmul %4, %5, %cst {dimension_numbers = #tpu.dot_dimension_numbers<[1], [0], [0], [1], [0, 0, 1, 1], [], []>} : vector<64x128xbf16>, vector<128x768xbf16>, vector<64x768xf32> -> vector<64x768xf32>
    %c0_5 = arith.constant 0 : index
    %c0_6 = arith.constant 0 : index
    %7 = vector.load %arg8[%c0_5, %c0_6] : memref<1x768xf32, #tpu.memory_space<vmem>>, vector<1x768xf32>
    %cst_7 = arith.constant dense<0.000000e+00> : vector<768xf32>
    %8 = vector.multi_reduction <add>, %6, %cst_7 [0] : vector<64x768xf32> to vector<768xf32>
    %9 = vector.shape_cast %8 : vector<768xf32> to vector<1x768xf32>
    %10 = arith.addf %7, %9 : vector<1x768xf32>
    %c0_8 = arith.constant 0 : index
    %c0_9 = arith.constant 0 : index
    %11 = vector.load %arg8[%c0_8, %c0_9] : memref<1x768xf32, #tpu.memory_space<vmem>>, vector<1x768xf32>
    tpu.vector_store %arg8[%c0_8, %c0_9], %10 {strides = array<i32>} : memref<1x768xf32, #tpu.memory_space<vmem>>, vector<1x768xf32>,
    %c0_i32_10 = arith.constant 0 : i32
    %12 = arith.cmpi eq, %arg1, %c0_i32_10 : i32
    %13 = arith.extui %12 : i1 to i32
    %c0_i32_11 = arith.constant 0 : i32
    %14 = arith.cmpi ne, %13, %c0_i32_11 : i32
    scf.if %14 {
      %c0_12 = arith.constant 0 : index
      %c0_13 = arith.constant 0 : index
      %15 = vector.load %arg8[%c0_12, %c0_13] : memref<1x768xf32, #tpu.memory_space<vmem>>, vector<1x768xf32>
      %cst_14 = arith.constant 1.562500e-02 : f32
      %16 = vector.broadcast %cst_14 : f32 to vector<1x768xf32>
      %17 = arith.mulf %15, %16 : vector<1x768xf32>
      %c0_15 = arith.constant 0 : index
      %c0_16 = arith.constant 0 : index
      %18 = vector.load %arg5[%c0_15, %c0_16] : memref<1x768xf32, #tpu.memory_space<vmem>>, vector<1x768xf32>
      %19 = arith.addf %17, %18 : vector<1x768xf32>
      %20 = arith.truncf %19 : vector<1x768xf32> to vector<1x768xbf16>
      %c0_17 = arith.constant 0 : index
      %c0_18 = arith.constant 0 : index
      %21 = vector.load %arg4[%c0_17, %c0_18] : memref<768x256xbf16, #tpu.memory_space<vmem>>, vector<768x256xbf16>
      %cst_19 = arith.constant dense<0.000000e+00> : vector<1x256xf32>
      %22 = tpu.matmul %20, %21, %cst_19 {dimension_numbers = #tpu.dot_dimension_numbers<[1], [0], [0], [1], [0, 0, 1, 1], [], []>} : vector<1x768xbf16>, vector<768x256xbf16>, vector<1x256xf32> -> vector<1x256xf32>
      %c0_20 = arith.constant 0 : index
      %c0_21 = arith.constant 0 : index
      %23 = vector.load %arg6[%c0_20, %c0_21] : memref<1x256xf32, #tpu.memory_space<vmem>>, vector<1x256xf32>
      %24 = arith.addf %22, %23 : vector<1x256xf32>
      %25 = vector.shape_cast %24 : vector<1x256xf32> to vector<1x1x256xf32>
      %c0_22 = arith.constant 0 : index
      %c0_23 = arith.constant 0 : index
      %c0_24 = arith.constant 0 : index
      %26 = vector.load %arg7[%c0_22, %c0_23, %c0_24] : memref<1x1x256xf32, #tpu.memory_space<vmem>>, vector<1x1x256xf32>
      tpu.vector_store %arg7[%c0_22, %c0_23, %c0_24], %25 {strides = array<i32>} : memref<1x1x256xf32, #tpu.memory_space<vmem>>, vector<1x1x256xf32>,
    } else {
    }
    return
  }
  func.func @transform_0(%arg0: i32, %arg1: i32) -> (i32, i32, i32) {
    %c0_i32 = arith.constant 0 : i32
    %c0_i32_0 = arith.constant 0 : i32
    return %arg0, %arg1, %c0_i32 : i32, i32, i32
  }
  func.func @transform_1(%arg0: i32, %arg1: i32) -> (i32, i32) {
    %c0_i32 = arith.constant 0 : i32
    %c0_i32_0 = arith.constant 0 : i32
    %c0_i32_1 = arith.constant 0 : i32
    return %c0_i32, %c0_i32_0 : i32, i32
  }
  func.func @transform_2(%arg0: i32, %arg1: i32) -> (i32, i32) {
    %c0_i32 = arith.constant 0 : i32
    %c0_i32_0 = arith.constant 0 : i32
    %c0_i32_1 = arith.constant 0 : i32
    return %c0_i32, %c0_i32_0 : i32, i32
  }
  func.func @transform_3(%arg0: i32, %arg1: i32) -> (i32, i32) {
    %c0_i32 = arith.constant 0 : i32
    %c0_i32_0 = arith.constant 0 : i32
    %c0_i32_1 = arith.constant 0 : i32
    return %c0_i32, %c0_i32_0 : i32, i32
  }
  func.func @transform_4(%arg0: i32, %arg1: i32) -> (i32, i32) {
    %c0_i32 = arith.constant 0 : i32
    %c0_i32_0 = arith.constant 0 : i32
    %c0_i32_1 = arith.constant 0 : i32
    return %c0_i32, %c0_i32_0 : i32, i32
  }
  func.func @transform_5(%arg0: i32, %arg1: i32) -> (i32, i32, i32) {
    %c0_i32 = arith.constant 0 : i32
    %c0_i32_0 = arith.constant 0 : i32
    %c0_i32_1 = arith.constant 0 : i32
    return %arg0, %c0_i32, %c0_i32_0 : i32, i32, i32
  }
}

</mosaic_0001>

<llo_original>
// kernel: model3_forward.1
$region0: #{model3_forward.1}
  #allocation0 [shape = 'u32[]', space=smem, size = 0x4, offset = 0x4, fixed_abs, tag = 'smem constant byte address 0x4 - core index']
  #allocation1 [shape = 'u32[72,128]{1,0:T(1,128)}', space=vmem, size = 0x9000, scoped, tag = 'internal scratch']
  #allocation2 [shape = 'f32[1,768]{1,0:T(1,128)}', space=vmem, size = 0xc00, scoped, tag = 'scratch operand']
  %s0 = inlined_call_operand.vmem [shape: bf16[2,64,128], index: 0, kind: input, shape index: {}]
  %s1 = inlined_call_operand.vmem [shape: bf16[128,768], index: 1, kind: input, shape index: {}]
  %s2 = inlined_call_operand.vmem [shape: bf16[768,256], index: 2, kind: input, shape index: {}]
  %s3 = inlined_call_operand.vmem [shape: f32[1,768], index: 3, kind: input, shape index: {}]
  %s4 = inlined_call_operand.vmem [shape: f32[1,256], index: 4, kind: input, shape index: {}]
  %s5 = inlined_call_operand.vmem [shape: f32[2,1,256], index: 5, kind: output, shape index: {}]
  %s6 = sld [smem:[#allocation0]]
  $region61: #{model3_forward.1} parent=0
    _
  %s8 = ssub.s32 1, %s6
  %s9 = scalar_select 0, %s8, %s6
  loop: start=0, step=1, limit=4
  $region2: #{model3_forward.1} parent=0 // loop_pre_header
    _
  $region3: #{model3_forward.1} parent=0 // loop_header
    %s11 = sphi 0, %s15
    %p12 = scmp.ge.s32.totalorder %s11, 4
    %s18 = sphi 0, %s30
    %s19 = sphi 0, %s26
    %s20 = sphi 0, %s18
    %s21 = sphi 0, %s19
    %s22 = sphi 0, %s20
    %s23 = sphi 0, %s21
    %s35 = sphi 0, %s37
    %s38 = sphi 0, %s35
    %s39 = sphi 0, %s38
    %s55 = sphi 0, %s39
    %s59 = sphi 0, %s59
    %s61 = sphi 0, %s59
    %s62 = sphi 0, %s61
    %s76 = sphi 0, %s62
    %s80 = sphi 0, %s80
    %s82 = sphi 0, %s80
    %s83 = sphi 0, %s82
    %s97 = sphi 0, %s83
    %s101 = sphi 0, %s101
    %s103 = sphi 0, %s101
    %s104 = sphi 0, %s103
    %s118 = sphi 0, %s104
    %s122 = sphi 0, %s122
    %s124 = sphi 0, %s122
    %s125 = sphi 0, %s124
    %s139 = sphi 0, %s125
    %s145 = sphi 0, %s147
    %s148 = sphi 0, %s145
    %s149 = sphi 0, %s148
    %s165 = sphi 0, %s149
  $region4: #{model3_forward.1} parent=0 // loop_header_branch
    %14 = sbr.rel (%p12) target = $region8
  $region5: #{model3_forward.1} parent=0 // loop_body
    %s16 = ssub.s32 %s11, 1
    %s17 = ssub.s32 %s11, 2
    %s24 = sadd.s32 1, %s19
    %p25 = scmp.ge.s32.totalorder %s24, 1
    %s26 = scalar_select %p25, 0, %s24
    %s27 = sadd.s32 1, %s18
    %s28 = scalar_select %p25, %s27, %s18
    %p29 = scmp.ge.s32.totalorder %s28, 2
    %s30 = scalar_select %p29, 0, %s28
    %s31 = ssub.s32 %s18, %s30
    %s32 = ssub.s32 %s19, %s26
    %s33 = sor.u32 %s31, %s32
    %p34 = scmp.eq.s32.totalorder %s33, 0
    %s36 = sadd.s32 %s35, 1
    %s37 = scalar_select %p34, %s35, %s36
    %p40 = pneg %p34
    %p41 = scmp.eq.s32.totalorder %s11, 1
    %p42 = por %p40, %p41
    %p43 = scmp.ne.s32.totalorder %s35, %s38
    %p44 = scmp.eq.s32.totalorder %s11, 0
    %p45 = por %p43, %p44
    %p46 = scmp.ne.s32.totalorder %s35, %s38
    %p47 = scmp.eq.s32.totalorder %s16, 1
    %p48 = por %p46, %p47
    %p49 = scmp.ne.s32.totalorder %s38, %s39
    %p50 = scmp.eq.s32.totalorder %s16, 0
    %p51 = por %p49, %p50
    %p52 = scmp.ne.s32.totalorder %s38, %s39
    %p53 = scmp.eq.s32.totalorder %s17, 1
    %p54 = por %p52, %p53
    %p56 = scmp.ne.s32.totalorder %s39, %s55
    %p57 = scmp.eq.s32.totalorder %s17, 0
    %p58 = por %p56, %p57
    %s60 = sadd.s32 %s59, 1
    %p63 = scmp.eq.s32.totalorder %s11, 1
    %p64 = scmp.ne.s32.totalorder %s59, %s61
    %p65 = scmp.eq.s32.totalorder %s11, 0
    %p66 = por %p64, %p65
    %p67 = scmp.ne.s32.totalorder %s59, %s61
    %p68 = scmp.eq.s32.totalorder %s16, 1
    %p69 = por %p67, %p68
    %p70 = scmp.ne.s32.totalorder %s61, %s62
    %p71 = scmp.eq.s32.totalorder %s16, 0
    %p72 = por %p70, %p71
    %p73 = scmp.ne.s32.totalorder %s61, %s62
    %p74 = scmp.eq.s32.totalorder %s17, 1
    %p75 = por %p73, %p74
    %p77 = scmp.ne.s32.totalorder %s62, %s76
    %p78 = scmp.eq.s32.totalorder %s17, 0
    %p79 = por %p77, %p78
    %s81 = sadd.s32 %s80, 1
    %p84 = scmp.eq.s32.totalorder %s11, 1
    %p85 = scmp.ne.s32.totalorder %s80, %s82
    %p86 = scmp.eq.s32.totalorder %s11, 0
    %p87 = por %p85, %p86
    %p88 = scmp.ne.s32.totalorder %s80, %s82
    %p89 = scmp.eq.s32.totalorder %s16, 1
    %p90 = por %p88, %p89
    %p91 = scmp.ne.s32.totalorder %s82, %s83
    %p92 = scmp.eq.s32.totalorder %s16, 0
    %p93 = por %p91, %p92
    %p94 = scmp.ne.s32.totalorder %s82, %s83
    %p95 = scmp.eq.s32.totalorder %s17, 1
    %p96 = por %p94, %p95
    %p98 = scmp.ne.s32.totalorder %s83, %s97
    %p99 = scmp.eq.s32.totalorder %s17, 0
    %p100 = por %p98, %p99
    %s102 = sadd.s32 %s101, 1
    %p105 = scmp.eq.s32.totalorder %s11, 1
    %p106 = scmp.ne.s32.totalorder %s101, %s103
    %p107 = scmp.eq.s32.totalorder %s11, 0
    %p108 = por %p106, %p107
    %p109 = scmp.ne.s32.totalorder %s101, %s103
    %p110 = scmp.eq.s32.totalorder %s16, 1
    %p111 = por %p109, %p110
    %p112 = scmp.ne.s32.totalorder %s103, %s104
    %p113 = scmp.eq.s32.totalorder %s16, 0
    %p114 = por %p112, %p113
    %p115 = scmp.ne.s32.totalorder %s103, %s104
    %p116 = scmp.eq.s32.totalorder %s17, 1
    %p117 = por %p115, %p116
    %p119 = scmp.ne.s32.totalorder %s104, %s118
    %p120 = scmp.eq.s32.totalorder %s17, 0
    %p121 = por %p119, %p120
    %s123 = sadd.s32 %s122, 1
    %p126 = scmp.eq.s32.totalorder %s11, 1
    %p127 = scmp.ne.s32.totalorder %s122, %s124
    %p128 = scmp.eq.s32.totalorder %s11, 0
    %p129 = por %p127, %p128
    %p130 = scmp.ne.s32.totalorder %s122, %s124
    %p131 = scmp.eq.s32.totalorder %s16, 1
    %p132 = por %p130, %p131
    %p133 = scmp.ne.s32.totalorder %s124, %s125
    %p134 = scmp.eq.s32.totalorder %s16, 0
    %p135 = por %p133, %p134
    %p136 = scmp.ne.s32.totalorder %s124, %s125
    %p137 = scmp.eq.s32.totalorder %s17, 1
    %p138 = por %p136, %p137
    %p140 = scmp.ne.s32.totalorder %s125, %s139
    %p141 = scmp.eq.s32.totalorder %s17, 0
    %p142 = por %p140, %p141
    %s143 = ssub.s32 %s18, %s30
    %p144 = scmp.eq.s32.totalorder %s143, 0
    %s146 = sadd.s32 %s145, 1
    %s147 = scalar_select %p144, %s145, %s146
    %p150 = pneg %p144
    %p151 = scmp.eq.s32.totalorder %s11, 1
    %p152 = por %p150, %p151
    %p153 = scmp.ne.s32.totalorder %s145, %s148
    %p154 = scmp.eq.s32.totalorder %s11, 0
    %p155 = por %p153, %p154
    %p156 = scmp.ne.s32.totalorder %s145, %s148
    %p157 = scmp.eq.s32.totalorder %s16, 1
    %p158 = por %p156, %p157
    %p159 = scmp.ne.s32.totalorder %s148, %s149
    %p160 = scmp.eq.s32.totalorder %s16, 0
    %p161 = por %p159, %p160
    %p162 = scmp.ne.s32.totalorder %s148, %s149
    %p163 = scmp.eq.s32.totalorder %s17, 1
    %p164 = por %p162, %p163
    %p166 = scmp.ne.s32.totalorder %s149, %s165
    %p167 = scmp.eq.s32.totalorder %s17, 0
    %p168 = por %p166, %p167
    %p169 = scmp.le.s32.totalorder 1, %s11
    %p170 = scmp.lt.s32.totalorder %s11, 3
    %p171 = pnand %p169, %p170
    %p172 = pneg %p171
    // Predicated region
    $region9: #{model3_forward.1} parent=5 // pred_check
      _
    $region10: #{model3_forward.1} parent=5 // pred_check_branch
      %174 = sbr.rel (%p171) target = $region12
    $region11: #{model3_forward.1} parent=5 // pred_region
      %s175 = ssub.s32 %s11, 1
      // Predicated region
      $region13: #{model3_forward.1} parent=11 // pred_check
        %p176 = pneg %p72
      $region14: #{model3_forward.1} parent=11 // pred_check_branch
        %178 = sbr.rel (%p176) target = $region16
      $region15: #{model3_forward.1} parent=11 // pred_region
        _
      $region16: #{model3_forward.1} parent=11 // pred_fallthru
        _
      // Predicated region
      $region17: #{model3_forward.1} parent=11 // pred_check
        %p179 = pneg %p93
      $region18: #{model3_forward.1} parent=11 // pred_check_branch
        %181 = sbr.rel (%p179) target = $region20
      $region19: #{model3_forward.1} parent=11 // pred_region
        _
      $region20: #{model3_forward.1} parent=11 // pred_fallthru
        _
      // Predicated region
      $region21: #{model3_forward.1} parent=11 // pred_check
        %p182 = pneg %p114
      $region22: #{model3_forward.1} parent=11 // pred_check_branch
        %184 = sbr.rel (%p182) target = $region24
      $region23: #{model3_forward.1} parent=11 // pred_region
        _
      $region24: #{model3_forward.1} parent=11 // pred_fallthru
        _
      // Predicated region
      $region25: #{model3_forward.1} parent=11 // pred_check
        %p185 = pneg %p135
      $region26: #{model3_forward.1} parent=11 // pred_check_branch
        %187 = sbr.rel (%p185) target = $region28
      $region27: #{model3_forward.1} parent=11 // pred_region
        _
      $region28: #{model3_forward.1} parent=11 // pred_fallthru
        _
    $region12: #{model3_forward.1} parent=5 // pred_fallthru
      _
    %p188 = scmp.lt.s32.totalorder %s11, 2
    // Predicated region
    $region29: #{model3_forward.1} parent=5 // pred_check
      %p189 = pneg %p188
    $region30: #{model3_forward.1} parent=5 // pred_check_branch
      %191 = sbr.rel (%p189) target = $region32
    $region31: #{model3_forward.1} parent=5 // pred_region
      // Predicated region
      $region33: #{model3_forward.1} parent=31 // pred_check
        %p192 = pneg %p45
      $region34: #{model3_forward.1} parent=31 // pred_check_branch
        %194 = sbr.rel (%p192) target = $region36
      $region35: #{model3_forward.1} parent=31 // pred_region
        %s195 = smul.u32 8, %s19
        %p196 = scmp.lt.s32.totalorder %s18, 1
        %s197 = scalar_select %p196, %s18, 1
        %p198 = scmp.lt.s32.totalorder %s195, 7
        %s199 = scalar_select %p198, %s195, 7
        %s200 = smul.addr %s197, 8
        %s201 = sadd.s32 %s199, %s200
        %s202 = smul.addr %s201, 4
        %s203 = scalar_lea.vmem %s0, %s202
        %s204 = smul.u32 8, %s19
      $region36: #{model3_forward.1} parent=31 // pred_fallthru
        _
    $region32: #{model3_forward.1} parent=5 // pred_fallthru
      _
    %p205 = scmp.le.s32.totalorder 1, %s11
    %p206 = scmp.lt.s32.totalorder %s11, 3
    %p207 = pnand %p205, %p206
    %p208 = pneg %p207
    // Predicated region
    $region37: #{model3_forward.1} parent=5 // pred_check
      _
    $region38: #{model3_forward.1} parent=5 // pred_check_branch
      %210 = sbr.rel (%p207) target = $region40
    $region39: #{model3_forward.1} parent=5 // pred_region
      %s211 = ssub.s32 %s11, 1
      %s212 = smul.u32 8, %s21
      %p213 = scmp.lt.s32.totalorder %s20, 1
      %s214 = scalar_select %p213, %s20, 1
      %p215 = scmp.lt.s32.totalorder %s212, 7
      %s216 = scalar_select %p215, %s212, 7
      %s217 = smul.addr %s214, 8
      %s218 = sadd.s32 %s216, %s217
      %s219 = smul.addr %s218, 4
      %s220 = scalar_lea.vmem %s0, %s219
      %p221 = pneg %p51
      %p222 = pneg %p48
      %p223 = pneg %p72
      %p224 = pneg %p69
      %p225 = pneg %p93
      %p226 = pneg %p90
      %p227 = pneg %p114
      %p228 = pneg %p111
      %p229 = pneg %p135
      %p230 = pneg %p132
      %p231 = pneg %p161
      %p232 = pneg %p158
      %p233 = scmp.lt.s32.totalorder %s20, 1
      %s234 = scalar_select %p233, %s20, 1
      %s235 = smul.addr %s234, 2
      %s236 = scalar_lea.vmem %s5, %s235
      %s237 = smul.u32 8, %s21
      %p238 = scmp.lt.s32.totalorder %s20, 1
      %s239 = scalar_select %p238, %s20, 1
      %p240 = scmp.lt.s32.totalorder %s237, 7
      %s241 = scalar_select %p240, %s237, 7
      %s242 = smul.addr %s239, 8
      %s243 = sadd.s32 %s241, %s242
      %s244 = smul.addr %s243, 4
      %s245 = scalar_lea.vmem %s0, %s244
      %s246 = smul.u32 8, %s21
      %p247 = scmp.lt.s32.totalorder %s20, 1
      %s248 = scalar_select %p247, %s20, 1
      %s249 = smul.addr %s248, 2
      %s250 = scalar_lea.vmem %s5, %s249
      %p251 = scmp.eq.s32.totalorder %s21, 0
      // Predicated region
      $region41: #{model3_forward.1} parent=39 // pred_check
        %p252 = pneg %p251
      $region42: #{model3_forward.1} parent=39 // pred_check_branch
        %254 = sbr.rel (%p252) target = $region44
      $region43: #{model3_forward.1} parent=39 // pred_region
        %v255 = vlaneseq
        %vm256 = vcmp.ge.s32.totalorder %v255, 0
        %vm257 = vcmp.lt.s32.totalorder %v255, 768
        %vm258 = vmand %vm256, %vm257
        %259 = vst.msk [vmem:[#allocation2] sm:$0x3f] %vm258, 0.0
      $region44: #{model3_forward.1} parent=39 // pred_fallthru
        _
      %v260 = vld [vmem:[%s245] sm:$0xf]
      %v261 = vld [vmem:[%s245 + $0x4] sm:$0xf]
      %v262 = vld [vmem:[%s245 + $0x8] sm:$0xf]
      %v263 = vld [vmem:[%s245 + $0xc] sm:$0xf]
      %v264 = vld [vmem:[%s245 + $0x10] sm:$0xf]
      %v265 = vld [vmem:[%s245 + $0x14] sm:$0xf]
      %v266 = vld [vmem:[%s245 + $0x18] sm:$0xf]
      %v267 = vld [vmem:[%s245 + $0x1c] sm:$0xf]
      %v268 = vld [vmem:[%s1] sm:$0xff]
      %v269 = vld [vmem:[%s1 + $0x8] sm:$0xff]
      %v270 = vld [vmem:[%s1 + $0x10] sm:$0xff]
      %v271 = vld [vmem:[%s1 + $0x18] sm:$0xff]
      %v272 = vld [vmem:[%s1 + $0x20] sm:$0xff]
      %v273 = vld [vmem:[%s1 + $0x28] sm:$0xff]
      %v274 = vld [vmem:[%s1 + $0x30] sm:$0xff]
      %v275 = vld [vmem:[%s1 + $0x38] sm:$0xff]
      %v276 = vld [vmem:[%s1 + $0x40] sm:$0xff]
      %v277 = vld [vmem:[%s1 + $0x48] sm:$0xff]
      %v278 = vld [vmem:[%s1 + $0x50] sm:$0xff]
      %v279 = vld [vmem:[%s1 + $0x58] sm:$0xff]
      %v280 = vld [vmem:[%s1 + $0x60] sm:$0xff]
      %v281 = vld [vmem:[%s1 + $0x68] sm:$0xff]
      %v282 = vld [vmem:[%s1 + $0x70] sm:$0xff]
      %v283 = vld [vmem:[%s1 + $0x78] sm:$0xff]
      %v284 = vld [vmem:[%s1 + $0x80] sm:$0xff]
      %v285 = vld [vmem:[%s1 + $0x88] sm:$0xff]
      %v286 = vld [vmem:[%s1 + $0x90] sm:$0xff]
      %v287 = vld [vmem:[%s1 + $0x98] sm:$0xff]
      %v288 = vld [vmem:[%s1 + $0xa0] sm:$0xff]
      %v289 = vld [vmem:[%s1 + $0xa8] sm:$0xff]
      %v290 = vld [vmem:[%s1 + $0xb0] sm:$0xff]
      %v291 = vld [vmem:[%s1 + $0xb8] sm:$0xff]
      %v292 = vld [vmem:[%s1 + $0xc0] sm:$0xff]
      %v293 = vld [vmem:[%s1 + $0xc8] sm:$0xff]
      %v294 = vld [vmem:[%s1 + $0xd0] sm:$0xff]
      %v295 = vld [vmem:[%s1 + $0xd8] sm:$0xff]
      %v296 = vld [vmem:[%s1 + $0xe0] sm:$0xff]
      %v297 = vld [vmem:[%s1 + $0xe8] sm:$0xff]
      %v298 = vld [vmem:[%s1 + $0xf0] sm:$0xff]
      %v299 = vld [vmem:[%s1 + $0xf8] sm:$0xff]
      %v300 = vld [vmem:[%s1 + $0x100] sm:$0xff]
      %v301 = vld [vmem:[%s1 + $0x108] sm:$0xff]
      %v302 = vld [vmem:[%s1 + $0x110] sm:$0xff]
      %v303 = vld [vmem:[%s1 + $0x118] sm:$0xff]
      %v304 = vld [vmem:[%s1 + $0x120] sm:$0xff]
      %v305 = vld [vmem:[%s1 + $0x128] sm:$0xff]
      %v306 = vld [vmem:[%s1 + $0x130] sm:$0xff]
      %v307 = vld [vmem:[%s1 + $0x138] sm:$0xff]
      %v308 = vld [vmem:[%s1 + $0x140] sm:$0xff]
      %v309 = vld [vmem:[%s1 + $0x148] sm:$0xff]
      %v310 = vld [vmem:[%s1 + $0x150] sm:$0xff]
      %v311 = vld [vmem:[%s1 + $0x158] sm:$0xff]
      %v312 = vld [vmem:[%s1 + $0x160] sm:$0xff]
      %v313 = vld [vmem:[%s1 + $0x168] sm:$0xff]
      %v314 = vld [vmem:[%s1 + $0x170] sm:$0xff]
      %v315 = vld [vmem:[%s1 + $0x178] sm:$0xff]
      %v324 = vunpack.c.l.b16 %v260
      %v325 = vunpack.c.l.b16 %v261
      %v326 = vunpack.c.l.b16 %v262
      %v327 = vunpack.c.l.b16 %v263
      %v328 = vunpack.c.l.b16 %v264
      %v329 = vunpack.c.l.b16 %v265
      %v330 = vunpack.c.l.b16 %v266
      %v331 = vunpack.c.l.b16 %v267
      %v332 = vpack.c.b16 %v325, %v324
      %v333 = vpack.c.b16 %v327, %v326
      %v334 = vpack.c.b16 %v329, %v328
      %v335 = vpack.c.b16 %v331, %v330
      %v388 = vunpack.c.l.b16 %v268
      %v389 = vunpack.c.h.b16 %v268
      %v390 = vunpack.c.l.b16 %v269
      %v391 = vunpack.c.h.b16 %v269
      %v392 = vunpack.c.l.b16 %v270
      %v393 = vunpack.c.h.b16 %v270
      %v394 = vunpack.c.l.b16 %v271
      %v395 = vunpack.c.h.b16 %v271
      %v396 = vunpack.c.l.b16 %v272
      %v397 = vunpack.c.h.b16 %v272
      %v398 = vunpack.c.l.b16 %v273
      %v399 = vunpack.c.h.b16 %v273
      %v400 = vunpack.c.l.b16 %v274
      %v401 = vunpack.c.h.b16 %v274
      %v402 = vunpack.c.l.b16 %v275
      %v403 = vunpack.c.h.b16 %v275
      %v404 = vunpack.c.l.b16 %v276
      %v405 = vunpack.c.h.b16 %v276
      %v406 = vunpack.c.l.b16 %v277
      %v407 = vunpack.c.h.b16 %v277
      %v408 = vunpack.c.l.b16 %v278
      %v409 = vunpack.c.h.b16 %v278
      %v410 = vunpack.c.l.b16 %v279
      %v411 = vunpack.c.h.b16 %v279
      %v412 = vunpack.c.l.b16 %v280
      %v413 = vunpack.c.h.b16 %v280
      %v414 = vunpack.c.l.b16 %v281
      %v415 = vunpack.c.h.b16 %v281
      %v416 = vunpack.c.l.b16 %v282
      %v417 = vunpack.c.h.b16 %v282
      %v418 = vunpack.c.l.b16 %v283
      %v419 = vunpack.c.h.b16 %v283
      %v420 = vunpack.c.l.b16 %v284
      %v421 = vunpack.c.h.b16 %v284
      %v422 = vunpack.c.l.b16 %v285
      %v423 = vunpack.c.h.b16 %v285
      %v424 = vunpack.c.l.b16 %v286
      %v425 = vunpack.c.h.b16 %v286
      %v426 = vunpack.c.l.b16 %v287
      %v427 = vunpack.c.h.b16 %v287
      %v428 = vunpack.c.l.b16 %v288
      %v429 = vunpack.c.h.b16 %v288
      %v430 = vunpack.c.l.b16 %v289
      %v431 = vunpack.c.h.b16 %v289
      %v432 = vunpack.c.l.b16 %v290
      %v433 = vunpack.c.h.b16 %v290
      %v434 = vunpack.c.l.b16 %v291
      %v435 = vunpack.c.h.b16 %v291
      %v436 = vunpack.c.l.b16 %v292
      %v437 = vunpack.c.h.b16 %v292
      %v438 = vunpack.c.l.b16 %v293
      %v439 = vunpack.c.h.b16 %v293
      %v440 = vunpack.c.l.b16 %v294
      %v441 = vunpack.c.h.b16 %v294
      %v442 = vunpack.c.l.b16 %v295
      %v443 = vunpack.c.h.b16 %v295
      %v444 = vunpack.c.l.b16 %v296
      %v445 = vunpack.c.h.b16 %v296
      %v446 = vunpack.c.l.b16 %v297
      %v447 = vunpack.c.h.b16 %v297
      %v448 = vunpack.c.l.b16 %v298
      %v449 = vunpack.c.h.b16 %v298
      %v450 = vunpack.c.l.b16 %v299
      %v451 = vunpack.c.h.b16 %v299
      %v452 = vunpack.c.l.b16 %v300
      %v453 = vunpack.c.h.b16 %v300
      %v454 = vunpack.c.l.b16 %v301
      %v455 = vunpack.c.h.b16 %v301
      %v456 = vunpack.c.l.b16 %v302
      %v457 = vunpack.c.h.b16 %v302
      %v458 = vunpack.c.l.b16 %v303
      %v459 = vunpack.c.h.b16 %v303
      %v460 = vunpack.c.l.b16 %v304
      %v461 = vunpack.c.h.b16 %v304
      %v462 = vunpack.c.l.b16 %v305
      %v463 = vunpack.c.h.b16 %v305
      %v464 = vunpack.c.l.b16 %v306
      %v465 = vunpack.c.h.b16 %v306
      %v466 = vunpack.c.l.b16 %v307
      %v467 = vunpack.c.h.b16 %v307
      %v468 = vunpack.c.l.b16 %v308
      %v469 = vunpack.c.h.b16 %v308
      %v470 = vunpack.c.l.b16 %v309
      %v471 = vunpack.c.h.b16 %v309
      %v472 = vunpack.c.l.b16 %v310
      %v473 = vunpack.c.h.b16 %v310
      %v474 = vunpack.c.l.b16 %v311
      %v475 = vunpack.c.h.b16 %v311
      %v476 = vunpack.c.l.b16 %v312
      %v477 = vunpack.c.h.b16 %v312
      %v478 = vunpack.c.l.b16 %v313
      %v479 = vunpack.c.h.b16 %v313
      %v480 = vunpack.c.l.b16 %v314
      %v481 = vunpack.c.h.b16 %v314
      %v482 = vunpack.c.l.b16 %v315
      %v483 = vunpack.c.h.b16 %v315
      %v484 = vpack.c.b16 %v394, %v388
      %v485 = vpack.c.b16 %v395, %v389
      %v486 = vpack.c.b16 %v396, %v390
      %v487 = vpack.c.b16 %v397, %v391
      %v488 = vpack.c.b16 %v398, %v392
      %v489 = vpack.c.b16 %v399, %v393
      %v490 = vpack.c.b16 %v406, %v400
      %v491 = vpack.c.b16 %v407, %v401
      %v492 = vpack.c.b16 %v408, %v402
      %v493 = vpack.c.b16 %v409, %v403
      %v494 = vpack.c.b16 %v410, %v404
      %v495 = vpack.c.b16 %v411, %v405
      %v496 = vpack.c.b16 %v418, %v412
      %v497 = vpack.c.b16 %v419, %v413
      %v498 = vpack.c.b16 %v420, %v414
      %v499 = vpack.c.b16 %v421, %v415
      %v500 = vpack.c.b16 %v422, %v416
      %v501 = vpack.c.b16 %v423, %v417
      %v502 = vpack.c.b16 %v430, %v424
      %v503 = vpack.c.b16 %v431, %v425
      %v504 = vpack.c.b16 %v432, %v426
      %v505 = vpack.c.b16 %v433, %v427
      %v506 = vpack.c.b16 %v434, %v428
      %v507 = vpack.c.b16 %v435, %v429
      %v508 = vpack.c.b16 %v442, %v436
      %v509 = vpack.c.b16 %v443, %v437
      %v510 = vpack.c.b16 %v444, %v438
      %v511 = vpack.c.b16 %v445, %v439
      %v512 = vpack.c.b16 %v446, %v440
      %v513 = vpack.c.b16 %v447, %v441
      %v514 = vpack.c.b16 %v454, %v448
      %v515 = vpack.c.b16 %v455, %v449
      %v516 = vpack.c.b16 %v456, %v450
      %v517 = vpack.c.b16 %v457, %v451
      %v518 = vpack.c.b16 %v458, %v452
      %v519 = vpack.c.b16 %v459, %v453
      %v520 = vpack.c.b16 %v466, %v460
      %v521 = vpack.c.b16 %v467, %v461
      %v522 = vpack.c.b16 %v468, %v462
      %v523 = vpack.c.b16 %v469, %v463
      %v524 = vpack.c.b16 %v470, %v464
      %v525 = vpack.c.b16 %v471, %v465
      %v526 = vpack.c.b16 %v478, %v472
      %v527 = vpack.c.b16 %v479, %v473
      %v528 = vpack.c.b16 %v480, %v474
      %v529 = vpack.c.b16 %v481, %v475
      %v530 = vpack.c.b16 %v482, %v476
      %v531 = vpack.c.b16 %v483, %v477
      %580 = vmatpush.bf16.msra.mxu0 %v526
      %581 = vmatpush.bf16.msra.mxu0 %v520
      %582 = vmatpush.bf16.msra.mxu0 %v514
      %583 = vmatpush.bf16.msra.mxu0 %v508
      %584 = vmatpush.bf16.msra.mxu0 %v502
      %585 = vmatpush.bf16.msra.mxu0 %v496
      %586 = vmatpush.bf16.msra.mxu0 %v490
      %587 = vmatpush.bf16.msra.mxu0 %v484
      %588 = vmatmul.bf16.gmra.mxu0 %v332
      %v589 = vpop.f32.mrf.mxu0
      %v590 = vadd.f32 0.0, %v589
      %v591 = vpop.f32.mrf.mxu0
      %v592 = vadd.f32 0.0, %v591
      %593 = vmatmul.bf16.gmra.mxu0 %v333
      %v594 = vpop.f32.mrf.mxu0
      %v595 = vadd.f32 0.0, %v594
      %v596 = vpop.f32.mrf.mxu0
      %v597 = vadd.f32 0.0, %v596
      %598 = vmatmul.bf16.gmra.mxu0 %v334
      %v599 = vpop.f32.mrf.mxu0
      %v600 = vadd.f32 0.0, %v599
      %v601 = vpop.f32.mrf.mxu0
      %v602 = vadd.f32 0.0, %v601
      %603 = vmatmul.bf16.gmra.mxu0 %v335
      %v604 = vpop.f32.mrf.mxu0
      %v605 = vadd.f32 0.0, %v604
      %v606 = vpop.f32.mrf.mxu0
      %v607 = vadd.f32 0.0, %v606
      %608 = vdwg.mxu0
      %609 = vmatpush.bf16.msra.mxu0 %v527
      %610 = vmatpush.bf16.msra.mxu0 %v521
      %611 = vmatpush.bf16.msra.mxu0 %v515
      %612 = vmatpush.bf16.msra.mxu0 %v509
      %613 = vmatpush.bf16.msra.mxu0 %v503
      %614 = vmatpush.bf16.msra.mxu0 %v497
      %615 = vmatpush.bf16.msra.mxu0 %v491
      %616 = vmatpush.bf16.msra.mxu0 %v485
      %617 = vmatmul.bf16.gmra.mxu0 %v332
      %v618 = vpop.f32.mrf.mxu0
      %v619 = vadd.f32 0.0, %v618
      %v620 = vpop.f32.mrf.mxu0
      %v621 = vadd.f32 0.0, %v620
      %622 = vmatmul.bf16.gmra.mxu0 %v333
      %v623 = vpop.f32.mrf.mxu0
      %v624 = vadd.f32 0.0, %v623
      %v625 = vpop.f32.mrf.mxu0
      %v626 = vadd.f32 0.0, %v625
      %627 = vmatmul.bf16.gmra.mxu0 %v334
      %v628 = vpop.f32.mrf.mxu0
      %v629 = vadd.f32 0.0, %v628
      %v630 = vpop.f32.mrf.mxu0
      %v631 = vadd.f32 0.0, %v630
      %632 = vmatmul.bf16.gmra.mxu0 %v335
      %v633 = vpop.f32.mrf.mxu0
      %v634 = vadd.f32 0.0, %v633
      %v635 = vpop.f32.mrf.mxu0
      %v636 = vadd.f32 0.0, %v635
      %637 = vdwg.mxu0
      %638 = vmatpush.bf16.msra.mxu0 %v528
      %639 = vmatpush.bf16.msra.mxu0 %v522
      %640 = vmatpush.bf16.msra.mxu0 %v516
      %641 = vmatpush.bf16.msra.mxu0 %v510
      %642 = vmatpush.bf16.msra.mxu0 %v504
      %643 = vmatpush.bf16.msra.mxu0 %v498
      %644 = vmatpush.bf16.msra.mxu0 %v492
      %645 = vmatpush.bf16.msra.mxu0 %v486
      %646 = vmatmul.bf16.gmra.mxu0 %v332
      %v647 = vpop.f32.mrf.mxu0
      %v648 = vadd.f32 0.0, %v647
      %v649 = vpop.f32.mrf.mxu0
      %v650 = vadd.f32 0.0, %v649
      %651 = vmatmul.bf16.gmra.mxu0 %v333
      %v652 = vpop.f32.mrf.mxu0
      %v653 = vadd.f32 0.0, %v652
      %v654 = vpop.f32.mrf.mxu0
      %v655 = vadd.f32 0.0, %v654
      %656 = vmatmul.bf16.gmra.mxu0 %v334
      %v657 = vpop.f32.mrf.mxu0
      %v658 = vadd.f32 0.0, %v657
      %v659 = vpop.f32.mrf.mxu0
      %v660 = vadd.f32 0.0, %v659
      %661 = vmatmul.bf16.gmra.mxu0 %v335
      %v662 = vpop.f32.mrf.mxu0
      %v663 = vadd.f32 0.0, %v662
      %v664 = vpop.f32.mrf.mxu0
      %v665 = vadd.f32 0.0, %v664
      %666 = vdwg.mxu0
      %667 = vmatpush.bf16.msra.mxu0 %v529
      %668 = vmatpush.bf16.msra.mxu0 %v523
      %669 = vmatpush.bf16.msra.mxu0 %v517
      %670 = vmatpush.bf16.msra.mxu0 %v511
      %671 = vmatpush.bf16.msra.mxu0 %v505
      %672 = vmatpush.bf16.msra.mxu0 %v499
      %673 = vmatpush.bf16.msra.mxu0 %v493
      %674 = vmatpush.bf16.msra.mxu0 %v487
      %675 = vmatmul.bf16.gmra.mxu0 %v332
      %v676 = vpop.f32.mrf.mxu0
      %v677 = vadd.f32 0.0, %v676
      %v678 = vpop.f32.mrf.mxu0
      %v679 = vadd.f32 0.0, %v678
      %680 = vmatmul.bf16.gmra.mxu0 %v333
      %v681 = vpop.f32.mrf.mxu0
      %v682 = vadd.f32 0.0, %v681
      %v683 = vpop.f32.mrf.mxu0
      %v684 = vadd.f32 0.0, %v683
      %685 = vmatmul.bf16.gmra.mxu0 %v334
      %v686 = vpop.f32.mrf.mxu0
      %v687 = vadd.f32 0.0, %v686
      %v688 = vpop.f32.mrf.mxu0
      %v689 = vadd.f32 0.0, %v688
      %690 = vmatmul.bf16.gmra.mxu0 %v335
      %v691 = vpop.f32.mrf.mxu0
      %v692 = vadd.f32 0.0, %v691
      %v693 = vpop.f32.mrf.mxu0
      %v694 = vadd.f32 0.0, %v693
      %695 = vdwg.mxu0
      %696 = vmatpush.bf16.msra.mxu0 %v530
      %697 = vmatpush.bf16.msra.mxu0 %v524
      %698 = vmatpush.bf16.msra.mxu0 %v518
      %699 = vmatpush.bf16.msra.mxu0 %v512
      %700 = vmatpush.bf16.msra.mxu0 %v506
      %701 = vmatpush.bf16.msra.mxu0 %v500
      %702 = vmatpush.bf16.msra.mxu0 %v494
      %703 = vmatpush.bf16.msra.mxu0 %v488
      %704 = vmatmul.bf16.gmra.mxu0 %v332
      %v705 = vpop.f32.mrf.mxu0
      %v706 = vadd.f32 0.0, %v705
      %v707 = vpop.f32.mrf.mxu0
      %v708 = vadd.f32 0.0, %v707
      %709 = vmatmul.bf16.gmra.mxu0 %v333
      %v710 = vpop.f32.mrf.mxu0
      %v711 = vadd.f32 0.0, %v710
      %v712 = vpop.f32.mrf.mxu0
      %v713 = vadd.f32 0.0, %v712
      %714 = vmatmul.bf16.gmra.mxu0 %v334
      %v715 = vpop.f32.mrf.mxu0
      %v716 = vadd.f32 0.0, %v715
      %v717 = vpop.f32.mrf.mxu0
      %v718 = vadd.f32 0.0, %v717
      %719 = vmatmul.bf16.gmra.mxu0 %v335
      %v720 = vpop.f32.mrf.mxu0
      %v721 = vadd.f32 0.0, %v720
      %v722 = vpop.f32.mrf.mxu0
      %v723 = vadd.f32 0.0, %v722
      %724 = vdwg.mxu0
      %725 = vmatpush.bf16.msra.mxu0 %v531
      %726 = vmatpush.bf16.msra.mxu0 %v525
      %727 = vmatpush.bf16.msra.mxu0 %v519
      %728 = vmatpush.bf16.msra.mxu0 %v513
      %729 = vmatpush.bf16.msra.mxu0 %v507
      %730 = vmatpush.bf16.msra.mxu0 %v501
      %731 = vmatpush.bf16.msra.mxu0 %v495
      %732 = vmatpush.bf16.msra.mxu0 %v489
      %733 = vmatmul.bf16.gmra.mxu0 %v332
      %v734 = vpop.f32.mrf.mxu0
      %v735 = vadd.f32 0.0, %v734
      %v736 = vpop.f32.mrf.mxu0
      %v737 = vadd.f32 0.0, %v736
      %738 = vmatmul.bf16.gmra.mxu0 %v333
      %v739 = vpop.f32.mrf.mxu0
      %v740 = vadd.f32 0.0, %v739
      %v741 = vpop.f32.mrf.mxu0
      %v742 = vadd.f32 0.0, %v741
      %743 = vmatmul.bf16.gmra.mxu0 %v334
      %v744 = vpop.f32.mrf.mxu0
      %v745 = vadd.f32 0.0, %v744
      %v746 = vpop.f32.mrf.mxu0
      %v747 = vadd.f32 0.0, %v746
      %748 = vmatmul.bf16.gmra.mxu0 %v335
      %v749 = vpop.f32.mrf.mxu0
      %v750 = vadd.f32 0.0, %v749
      %v751 = vpop.f32.mrf.mxu0
      %v752 = vadd.f32 0.0, %v751
      %753 = vdwg.mxu0
      %v754 = vld [vmem:[#allocation2] sm:$0x3f]
      %v755 = vadd.f32 %v590, %v592
      %v756 = vadd.f32 %v755, %v595
      %v757 = vadd.f32 %v756, %v597
      %v758 = vadd.f32 %v757, %v600
      %v759 = vadd.f32 %v758, %v602
      %v760 = vadd.f32 %v759, %v605
      %v761 = vadd.f32 %v760, %v607
      %v762 = vrot.slane %v761, 4
      %v763 = vadd.f32 %v761, %v762
      %v764 = vrot.slane %v763, 2
      %v765 = vadd.f32 %v763, %v764
      %v766 = vrot.slane %v765, 1
      %v767 = vadd.f32 %v765, %v766
      %v768 = vadd.f32 %v619, %v621
      %v769 = vadd.f32 %v768, %v624
      %v770 = vadd.f32 %v769, %v626
      %v771 = vadd.f32 %v770, %v629
      %v772 = vadd.f32 %v771, %v631
      %v773 = vadd.f32 %v772, %v634
      %v774 = vadd.f32 %v773, %v636
      %v775 = vrot.slane %v774, 4
      %v776 = vadd.f32 %v774, %v775
      %v777 = vrot.slane %v776, 2
      %v778 = vadd.f32 %v776, %v777
      %v779 = vrot.slane %v778, 1
      %v780 = vadd.f32 %v778, %v779
      %v781 = vadd.f32 %v648, %v650
      %v782 = vadd.f32 %v781, %v653
      %v783 = vadd.f32 %v782, %v655
      %v784 = vadd.f32 %v783, %v658
      %v785 = vadd.f32 %v784, %v660
      %v786 = vadd.f32 %v785, %v663
      %v787 = vadd.f32 %v786, %v665
      %v788 = vrot.slane %v787, 4
      %v789 = vadd.f32 %v787, %v788
      %v790 = vrot.slane %v789, 2
      %v791 = vadd.f32 %v789, %v790
      %v792 = vrot.slane %v791, 1
      %v793 = vadd.f32 %v791, %v792
      %v794 = vadd.f32 %v677, %v679
      %v795 = vadd.f32 %v794, %v682
      %v796 = vadd.f32 %v795, %v684
      %v797 = vadd.f32 %v796, %v687
      %v798 = vadd.f32 %v797, %v689
      %v799 = vadd.f32 %v798, %v692
      %v800 = vadd.f32 %v799, %v694
      %v801 = vrot.slane %v800, 4
      %v802 = vadd.f32 %v800, %v801
      %v803 = vrot.slane %v802, 2
      %v804 = vadd.f32 %v802, %v803
      %v805 = vrot.slane %v804, 1
      %v806 = vadd.f32 %v804, %v805
      %v807 = vadd.f32 %v706, %v708
      %v808 = vadd.f32 %v807, %v711
      %v809 = vadd.f32 %v808, %v713
      %v810 = vadd.f32 %v809, %v716
      %v811 = vadd.f32 %v810, %v718
      %v812 = vadd.f32 %v811, %v721
      %v813 = vadd.f32 %v812, %v723
      %v814 = vrot.slane %v813, 4
      %v815 = vadd.f32 %v813, %v814
      %v816 = vrot.slane %v815, 2
      %v817 = vadd.f32 %v815, %v816
      %v818 = vrot.slane %v817, 1
      %v819 = vadd.f32 %v817, %v818
      %v820 = vadd.f32 %v735, %v737
      %v821 = vadd.f32 %v820, %v740
      %v822 = vadd.f32 %v821, %v742
      %v823 = vadd.f32 %v822, %v745
      %v824 = vadd.f32 %v823, %v747
      %v825 = vadd.f32 %v824, %v750
      %v826 = vadd.f32 %v825, %v752
      %v827 = vrot.slane %v826, 4
      %v828 = vadd.f32 %v826, %v827
      %v829 = vrot.slane %v828, 2
      %v830 = vadd.f32 %v828, %v829
      %v831 = vrot.slane %v830, 1
      %v832 = vadd.f32 %v830, %v831
      %v839 = vrot.slane %v780, 7
      %v840 = vrot.slane %v793, 6
      %v841 = vrot.slane %v806, 5
      %v842 = vrot.slane %v819, 4
      %v843 = vrot.slane %v832, 3
      %vm844 = vcmask 1040384
      %v845 = vsel %vm844, %v767, %v839
      %vm846 = vcmask 1041408
      %v847 = vsel %vm846, %v845, %v840
      %vm848 = vcmask 1043459
      %v849 = vsel %vm848, %v841, %v842
      %vm850 = vcmask 1044483
      %v851 = vsel %vm850, %v849, %v843
      %vm852 = vcmask 1042432
      %v853 = vsel %vm852, %v847, %v851
      %v855 = vadd.f32 %v754, %v853
      %v856 = vlaneseq
      %vm857 = vcmp.ge.s32.totalorder %v856, 0
      %vm858 = vcmp.lt.s32.totalorder %v856, 768
      %vm859 = vmand %vm857, %vm858
      %860 = vst.msk [vmem:[#allocation2] sm:$0x3f] %vm859, %v855
      // Predicated region
      $region45: #{model3_forward.1} parent=39 // pred_check
        %p861 = pneg %p251
      $region46: #{model3_forward.1} parent=39 // pred_check_branch
        %863 = sbr.rel (%p861) target = $region48
      $region47: #{model3_forward.1} parent=39 // pred_region
        %v864 = vld [vmem:[#allocation2] sm:$0x3f]
        %v865 = vmul.f32 %v864, 0.015625
        %v866 = vld [vmem:[%s3] sm:$0x3f]
        %v867 = vadd.f32 %v865, %v866
        %v869 = vperm.slane %v867, 0
        %v870 = vperm.slane %v867, 1
        %v871 = vperm.slane %v867, 2
        %v872 = vperm.slane %v867, 3
        %v873 = vperm.slane %v867, 4
        %v874 = vperm.slane %v867, 5
        %v881 = vpack.c.bf16 %v869, %v869
        %v882 = vpack.c.bf16 %v870, %v870
        %v883 = vpack.c.bf16 %v871, %v871
        %v884 = vpack.c.bf16 %v872, %v872
        %v885 = vpack.c.bf16 %v873, %v873
        %v886 = vpack.c.bf16 %v874, %v874
        %v887 = vld [vmem:[%s2] sm:$0xff]
        %v888 = vld [vmem:[%s2 + $0x8] sm:$0xff]
        %v889 = vld [vmem:[%s2 + $0x10] sm:$0xff]
        %v890 = vld [vmem:[%s2 + $0x18] sm:$0xff]
        %v891 = vld [vmem:[%s2 + $0x20] sm:$0xff]
        %v892 = vld [vmem:[%s2 + $0x28] sm:$0xff]
        %v893 = vld [vmem:[%s2 + $0x30] sm:$0xff]
        %v894 = vld [vmem:[%s2 + $0x38] sm:$0xff]
        %v895 = vld [vmem:[%s2 + $0x40] sm:$0xff]
        %v896 = vld [vmem:[%s2 + $0x48] sm:$0xff]
        %v897 = vld [vmem:[%s2 + $0x50] sm:$0xff]
        %v898 = vld [vmem:[%s2 + $0x58] sm:$0xff]
        %v899 = vld [vmem:[%s2 + $0x60] sm:$0xff]
        %v900 = vld [vmem:[%s2 + $0x68] sm:$0xff]
        %v901 = vld [vmem:[%s2 + $0x70] sm:$0xff]
        %v902 = vld [vmem:[%s2 + $0x78] sm:$0xff]
        %v903 = vld [vmem:[%s2 + $0x80] sm:$0xff]
        %v904 = vld [vmem:[%s2 + $0x88] sm:$0xff]
        %v905 = vld [vmem:[%s2 + $0x90] sm:$0xff]
        %v906 = vld [vmem:[%s2 + $0x98] sm:$0xff]
        %v907 = vld [vmem:[%s2 + $0xa0] sm:$0xff]
        %v908 = vld [vmem:[%s2 + $0xa8] sm:$0xff]
        %v909 = vld [vmem:[%s2 + $0xb0] sm:$0xff]
        %v910 = vld [vmem:[%s2 + $0xb8] sm:$0xff]
        %v911 = vld [vmem:[%s2 + $0xc0] sm:$0xff]
        %v912 = vld [vmem:[%s2 + $0xc8] sm:$0xff]
        %v913 = vld [vmem:[%s2 + $0xd0] sm:$0xff]
        %v914 = vld [vmem:[%s2 + $0xd8] sm:$0xff]
        %v915 = vld [vmem:[%s2 + $0xe0] sm:$0xff]
        %v916 = vld [vmem:[%s2 + $0xe8] sm:$0xff]
        %v917 = vld [vmem:[%s2 + $0xf0] sm:$0xff]
        %v918 = vld [vmem:[%s2 + $0xf8] sm:$0xff]
        %v919 = vld [vmem:[%s2 + $0x100] sm:$0xff]
        %v920 = vld [vmem:[%s2 + $0x108] sm:$0xff]
        %v921 = vld [vmem:[%s2 + $0x110] sm:$0xff]
        %v922 = vld [vmem:[%s2 + $0x118] sm:$0xff]
        %v923 = vld [vmem:[%s2 + $0x120] sm:$0xff]
        %v924 = vld [vmem:[%s2 + $0x128] sm:$0xff]
        %v925 = vld [vmem:[%s2 + $0x130] sm:$0xff]
        %v926 = vld [vmem:[%s2 + $0x138] sm:$0xff]
        %v927 = vld [vmem:[%s2 + $0x140] sm:$0xff]
        %v928 = vld [vmem:[%s2 + $0x148] sm:$0xff]
        %v929 = vld [vmem:[%s2 + $0x150] sm:$0xff]
        %v930 = vld [vmem:[%s2 + $0x158] sm:$0xff]
        %v931 = vld [vmem:[%s2 + $0x160] sm:$0xff]
        %v932 = vld [vmem:[%s2 + $0x168] sm:$0xff]
        %v933 = vld [vmem:[%s2 + $0x170] sm:$0xff]
        %v934 = vld [vmem:[%s2 + $0x178] sm:$0xff]
        %v935 = vld [vmem:[%s2 + $0x180] sm:$0xff]
        %v936 = vld [vmem:[%s2 + $0x188] sm:$0xff]
        %v937 = vld [vmem:[%s2 + $0x190] sm:$0xff]
        %v938 = vld [vmem:[%s2 + $0x198] sm:$0xff]
        %v939 = vld [vmem:[%s2 + $0x1a0] sm:$0xff]
        %v940 = vld [vmem:[%s2 + $0x1a8] sm:$0xff]
        %v941 = vld [vmem:[%s2 + $0x1b0] sm:$0xff]
        %v942 = vld [vmem:[%s2 + $0x1b8] sm:$0xff]
        %v943 = vld [vmem:[%s2 + $0x1c0] sm:$0xff]
        %v944 = vld [vmem:[%s2 + $0x1c8] sm:$0xff]
        %v945 = vld [vmem:[%s2 + $0x1d0] sm:$0xff]
        %v946 = vld [vmem:[%s2 + $0x1d8] sm:$0xff]
        %v947 = vld [vmem:[%s2 + $0x1e0] sm:$0xff]
        %v948 = vld [vmem:[%s2 + $0x1e8] sm:$0xff]
        %v949 = vld [vmem:[%s2 + $0x1f0] sm:$0xff]
        %v950 = vld [vmem:[%s2 + $0x1f8] sm:$0xff]
        %v951 = vld [vmem:[%s2 + $0x200] sm:$0xff]
        %v952 = vld [vmem:[%s2 + $0x208] sm:$0xff]
        %v953 = vld [vmem:[%s2 + $0x210] sm:$0xff]
        %v954 = vld [vmem:[%s2 + $0x218] sm:$0xff]
        %v955 = vld [vmem:[%s2 + $0x220] sm:$0xff]
        %v956 = vld [vmem:[%s2 + $0x228] sm:$0xff]
        %v957 = vld [vmem:[%s2 + $0x230] sm:$0xff]
        %v958 = vld [vmem:[%s2 + $0x238] sm:$0xff]
        %v959 = vld [vmem:[%s2 + $0x240] sm:$0xff]
        %v960 = vld [vmem:[%s2 + $0x248] sm:$0xff]
        %v961 = vld [vmem:[%s2 + $0x250] sm:$0xff]
        %v962 = vld [vmem:[%s2 + $0x258] sm:$0xff]
        %v963 = vld [vmem:[%s2 + $0x260] sm:$0xff]
        %v964 = vld [vmem:[%s2 + $0x268] sm:$0xff]
        %v965 = vld [vmem:[%s2 + $0x270] sm:$0xff]
        %v966 = vld [vmem:[%s2 + $0x278] sm:$0xff]
        %v967 = vld [vmem:[%s2 + $0x280] sm:$0xff]
        %v968 = vld [vmem:[%s2 + $0x288] sm:$0xff]
        %v969 = vld [vmem:[%s2 + $0x290] sm:$0xff]
        %v970 = vld [vmem:[%s2 + $0x298] sm:$0xff]
        %v971 = vld [vmem:[%s2 + $0x2a0] sm:$0xff]
        %v972 = vld [vmem:[%s2 + $0x2a8] sm:$0xff]
        %v973 = vld [vmem:[%s2 + $0x2b0] sm:$0xff]
        %v974 = vld [vmem:[%s2 + $0x2b8] sm:$0xff]
        %v975 = vld [vmem:[%s2 + $0x2c0] sm:$0xff]
        %v976 = vld [vmem:[%s2 + $0x2c8] sm:$0xff]
        %v977 = vld [vmem:[%s2 + $0x2d0] sm:$0xff]
        %v978 = vld [vmem:[%s2 + $0x2d8] sm:$0xff]
        %v979 = vld [vmem:[%s2 + $0x2e0] sm:$0xff]
        %v980 = vld [vmem:[%s2 + $0x2e8] sm:$0xff]
        %v981 = vld [vmem:[%s2 + $0x2f0] sm:$0xff]
        %v982 = vld [vmem:[%s2 + $0x2f8] sm:$0xff]
        %v983 = vld [vmem:[%s4] sm:$0x3]
        %v1080 = vunpack.c.l.b16 %v887
        %v1081 = vunpack.c.h.b16 %v887
        %v1082 = vunpack.c.l.b16 %v888
        %v1083 = vunpack.c.h.b16 %v888
        %v1084 = vunpack.c.l.b16 %v889
        %v1085 = vunpack.c.h.b16 %v889
        %v1086 = vunpack.c.l.b16 %v890
        %v1087 = vunpack.c.h.b16 %v890
        %v1088 = vunpack.c.l.b16 %v891
        %v1089 = vunpack.c.h.b16 %v891
        %v1090 = vunpack.c.l.b16 %v892
        %v1091 = vunpack.c.h.b16 %v892
        %v1092 = vunpack.c.l.b16 %v893
        %v1093 = vunpack.c.h.b16 %v893
        %v1094 = vunpack.c.l.b16 %v894
        %v1095 = vunpack.c.h.b16 %v894
        %v1096 = vunpack.c.l.b16 %v895
        %v1097 = vunpack.c.h.b16 %v895
        %v1098 = vunpack.c.l.b16 %v896
        %v1099 = vunpack.c.h.b16 %v896
        %v1100 = vunpack.c.l.b16 %v897
        %v1101 = vunpack.c.h.b16 %v897
        %v1102 = vunpack.c.l.b16 %v898
        %v1103 = vunpack.c.h.b16 %v898
        %v1104 = vunpack.c.l.b16 %v899
        %v1105 = vunpack.c.h.b16 %v899
        %v1106 = vunpack.c.l.b16 %v900
        %v1107 = vunpack.c.h.b16 %v900
        %v1108 = vunpack.c.l.b16 %v901
        %v1109 = vunpack.c.h.b16 %v901
        %v1110 = vunpack.c.l.b16 %v902
        %v1111 = vunpack.c.h.b16 %v902
        %v1112 = vunpack.c.l.b16 %v903
        %v1113 = vunpack.c.h.b16 %v903
        %v1114 = vunpack.c.l.b16 %v904
        %v1115 = vunpack.c.h.b16 %v904
        %v1116 = vunpack.c.l.b16 %v905
        %v1117 = vunpack.c.h.b16 %v905
        %v1118 = vunpack.c.l.b16 %v906
        %v1119 = vunpack.c.h.b16 %v906
        %v1120 = vunpack.c.l.b16 %v907
        %v1121 = vunpack.c.h.b16 %v907
        %v1122 = vunpack.c.l.b16 %v908
        %v1123 = vunpack.c.h.b16 %v908
        %v1124 = vunpack.c.l.b16 %v909
        %v1125 = vunpack.c.h.b16 %v909
        %v1126 = vunpack.c.l.b16 %v910
        %v1127 = vunpack.c.h.b16 %v910
        %v1128 = vunpack.c.l.b16 %v911
        %v1129 = vunpack.c.h.b16 %v911
        %v1130 = vunpack.c.l.b16 %v912
        %v1131 = vunpack.c.h.b16 %v912
        %v1132 = vunpack.c.l.b16 %v913
        %v1133 = vunpack.c.h.b16 %v913
        %v1134 = vunpack.c.l.b16 %v914
        %v1135 = vunpack.c.h.b16 %v914
        %v1136 = vunpack.c.l.b16 %v915
        %v1137 = vunpack.c.h.b16 %v915
        %v1138 = vunpack.c.l.b16 %v916
        %v1139 = vunpack.c.h.b16 %v916
        %v1140 = vunpack.c.l.b16 %v917
        %v1141 = vunpack.c.h.b16 %v917
        %v1142 = vunpack.c.l.b16 %v918
        %v1143 = vunpack.c.h.b16 %v918
        %v1144 = vunpack.c.l.b16 %v919
        %v1145 = vunpack.c.h.b16 %v919
        %v1146 = vunpack.c.l.b16 %v920
        %v1147 = vunpack.c.h.b16 %v920
        %v1148 = vunpack.c.l.b16 %v921
        %v1149 = vunpack.c.h.b16 %v921
        %v1150 = vunpack.c.l.b16 %v922
        %v1151 = vunpack.c.h.b16 %v922
        %v1152 = vunpack.c.l.b16 %v923
        %v1153 = vunpack.c.h.b16 %v923
        %v1154 = vunpack.c.l.b16 %v924
        %v1155 = vunpack.c.h.b16 %v924
        %v1156 = vunpack.c.l.b16 %v925
        %v1157 = vunpack.c.h.b16 %v925
        %v1158 = vunpack.c.l.b16 %v926
        %v1159 = vunpack.c.h.b16 %v926
        %v1160 = vunpack.c.l.b16 %v927
        %v1161 = vunpack.c.h.b16 %v927
        %v1162 = vunpack.c.l.b16 %v928
        %v1163 = vunpack.c.h.b16 %v928
        %v1164 = vunpack.c.l.b16 %v929
        %v1165 = vunpack.c.h.b16 %v929
        %v1166 = vunpack.c.l.b16 %v930
        %v1167 = vunpack.c.h.b16 %v930
        %v1168 = vunpack.c.l.b16 %v931
        %v1169 = vunpack.c.h.b16 %v931
        %v1170 = vunpack.c.l.b16 %v932
        %v1171 = vunpack.c.h.b16 %v932
        %v1172 = vunpack.c.l.b16 %v933
        %v1173 = vunpack.c.h.b16 %v933
        %v1174 = vunpack.c.l.b16 %v934
        %v1175 = vunpack.c.h.b16 %v934
        %v1176 = vunpack.c.l.b16 %v935
        %v1177 = vunpack.c.h.b16 %v935
        %v1178 = vunpack.c.l.b16 %v936
        %v1179 = vunpack.c.h.b16 %v936
        %v1180 = vunpack.c.l.b16 %v937
        %v1181 = vunpack.c.h.b16 %v937
        %v1182 = vunpack.c.l.b16 %v938
        %v1183 = vunpack.c.h.b16 %v938
        %v1184 = vunpack.c.l.b16 %v939
        %v1185 = vunpack.c.h.b16 %v939
        %v1186 = vunpack.c.l.b16 %v940
        %v1187 = vunpack.c.h.b16 %v940
        %v1188 = vunpack.c.l.b16 %v941
        %v1189 = vunpack.c.h.b16 %v941
        %v1190 = vunpack.c.l.b16 %v942
        %v1191 = vunpack.c.h.b16 %v942
        %v1192 = vunpack.c.l.b16 %v943
        %v1193 = vunpack.c.h.b16 %v943
        %v1194 = vunpack.c.l.b16 %v944
        %v1195 = vunpack.c.h.b16 %v944
        %v1196 = vunpack.c.l.b16 %v945
        %v1197 = vunpack.c.h.b16 %v945
        %v1198 = vunpack.c.l.b16 %v946
        %v1199 = vunpack.c.h.b16 %v946
        %v1200 = vunpack.c.l.b16 %v947
        %v1201 = vunpack.c.h.b16 %v947
        %v1202 = vunpack.c.l.b16 %v948
        %v1203 = vunpack.c.h.b16 %v948
        %v1204 = vunpack.c.l.b16 %v949
        %v1205 = vunpack.c.h.b16 %v949
        %v1206 = vunpack.c.l.b16 %v950
        %v1207 = vunpack.c.h.b16 %v950
        %v1208 = vunpack.c.l.b16 %v951
        %v1209 = vunpack.c.h.b16 %v951
        %v1210 = vunpack.c.l.b16 %v952
        %v1211 = vunpack.c.h.b16 %v952
        %v1212 = vunpack.c.l.b16 %v953
        %v1213 = vunpack.c.h.b16 %v953
        %v1214 = vunpack.c.l.b16 %v954
        %v1215 = vunpack.c.h.b16 %v954
        %v1216 = vunpack.c.l.b16 %v955
        %v1217 = vunpack.c.h.b16 %v955
        %v1218 = vunpack.c.l.b16 %v956
        %v1219 = vunpack.c.h.b16 %v956
        %v1220 = vunpack.c.l.b16 %v957
        %v1221 = vunpack.c.h.b16 %v957
        %v1222 = vunpack.c.l.b16 %v958
        %v1223 = vunpack.c.h.b16 %v958
        %v1224 = vunpack.c.l.b16 %v959
        %v1225 = vunpack.c.h.b16 %v959
        %v1226 = vunpack.c.l.b16 %v960
        %v1227 = vunpack.c.h.b16 %v960
        %v1228 = vunpack.c.l.b16 %v961
        %v1229 = vunpack.c.h.b16 %v961
        %v1230 = vunpack.c.l.b16 %v962
        %v1231 = vunpack.c.h.b16 %v962
        %v1232 = vunpack.c.l.b16 %v963
        %v1233 = vunpack.c.h.b16 %v963
        %v1234 = vunpack.c.l.b16 %v964
        %v1235 = vunpack.c.h.b16 %v964
        %v1236 = vunpack.c.l.b16 %v965
        %v1237 = vunpack.c.h.b16 %v965
        %v1238 = vunpack.c.l.b16 %v966
        %v1239 = vunpack.c.h.b16 %v966
        %v1240 = vunpack.c.l.b16 %v967
        %v1241 = vunpack.c.h.b16 %v967
        %v1242 = vunpack.c.l.b16 %v968
        %v1243 = vunpack.c.h.b16 %v968
        %v1244 = vunpack.c.l.b16 %v969
        %v1245 = vunpack.c.h.b16 %v969
        %v1246 = vunpack.c.l.b16 %v970
        %v1247 = vunpack.c.h.b16 %v970
        %v1248 = vunpack.c.l.b16 %v971
        %v1249 = vunpack.c.h.b16 %v971
        %v1250 = vunpack.c.l.b16 %v972
        %v1251 = vunpack.c.h.b16 %v972
        %v1252 = vunpack.c.l.b16 %v973
        %v1253 = vunpack.c.h.b16 %v973
        %v1254 = vunpack.c.l.b16 %v974
        %v1255 = vunpack.c.h.b16 %v974
        %v1256 = vunpack.c.l.b16 %v975
        %v1257 = vunpack.c.h.b16 %v975
        %v1258 = vunpack.c.l.b16 %v976
        %v1259 = vunpack.c.h.b16 %v976
        %v1260 = vunpack.c.l.b16 %v977
        %v1261 = vunpack.c.h.b16 %v977
        %v1262 = vunpack.c.l.b16 %v978
        %v1263 = vunpack.c.h.b16 %v978
        %v1264 = vunpack.c.l.b16 %v979
        %v1265 = vunpack.c.h.b16 %v979
        %v1266 = vunpack.c.l.b16 %v980
        %v1267 = vunpack.c.h.b16 %v980
        %v1268 = vunpack.c.l.b16 %v981
        %v1269 = vunpack.c.h.b16 %v981
        %v1270 = vunpack.c.l.b16 %v982
        %v1271 = vunpack.c.h.b16 %v982
        %v1272 = vpack.c.b16 %v1082, %v1080
        %v1273 = vpack.c.b16 %v1083, %v1081
        %v1274 = vpack.c.b16 %v1086, %v1084
        %v1275 = vpack.c.b16 %v1087, %v1085
        %v1276 = vpack.c.b16 %v1090, %v1088
        %v1277 = vpack.c.b16 %v1091, %v1089
        %v1278 = vpack.c.b16 %v1094, %v1092
        %v1279 = vpack.c.b16 %v1095, %v1093
        %v1280 = vpack.c.b16 %v1098, %v1096
        %v1281 = vpack.c.b16 %v1099, %v1097
        %v1282 = vpack.c.b16 %v1102, %v1100
        %v1283 = vpack.c.b16 %v1103, %v1101
        %v1284 = vpack.c.b16 %v1106, %v1104
        %v1285 = vpack.c.b16 %v1107, %v1105
        %v1286 = vpack.c.b16 %v1110, %v1108
        %v1287 = vpack.c.b16 %v1111, %v1109
        %v1288 = vpack.c.b16 %v1114, %v1112
        %v1289 = vpack.c.b16 %v1115, %v1113
        %v1290 = vpack.c.b16 %v1118, %v1116
        %v1291 = vpack.c.b16 %v1119, %v1117
        %v1292 = vpack.c.b16 %v1122, %v1120
        %v1293 = vpack.c.b16 %v1123, %v1121
        %v1294 = vpack.c.b16 %v1126, %v1124
        %v1295 = vpack.c.b16 %v1127, %v1125
        %v1296 = vpack.c.b16 %v1130, %v1128
        %v1297 = vpack.c.b16 %v1131, %v1129
        %v1298 = vpack.c.b16 %v1134, %v1132
        %v1299 = vpack.c.b16 %v1135, %v1133
        %v1300 = vpack.c.b16 %v1138, %v1136
        %v1301 = vpack.c.b16 %v1139, %v1137
        %v1302 = vpack.c.b16 %v1142, %v1140
        %v1303 = vpack.c.b16 %v1143, %v1141
        %v1304 = vpack.c.b16 %v1146, %v1144
        %v1305 = vpack.c.b16 %v1147, %v1145
        %v1306 = vpack.c.b16 %v1150, %v1148
        %v1307 = vpack.c.b16 %v1151, %v1149
        %v1308 = vpack.c.b16 %v1154, %v1152
        %v1309 = vpack.c.b16 %v1155, %v1153
        %v1310 = vpack.c.b16 %v1158, %v1156
        %v1311 = vpack.c.b16 %v1159, %v1157
        %v1312 = vpack.c.b16 %v1162, %v1160
        %v1313 = vpack.c.b16 %v1163, %v1161
        %v1314 = vpack.c.b16 %v1166, %v1164
        %v1315 = vpack.c.b16 %v1167, %v1165
        %v1316 = vpack.c.b16 %v1170, %v1168
        %v1317 = vpack.c.b16 %v1171, %v1169
        %v1318 = vpack.c.b16 %v1174, %v1172
        %v1319 = vpack.c.b16 %v1175, %v1173
        %v1320 = vpack.c.b16 %v1178, %v1176
        %v1321 = vpack.c.b16 %v1179, %v1177
        %v1322 = vpack.c.b16 %v1182, %v1180
        %v1323 = vpack.c.b16 %v1183, %v1181
        %v1324 = vpack.c.b16 %v1186, %v1184
        %v1325 = vpack.c.b16 %v1187, %v1185
        %v1326 = vpack.c.b16 %v1190, %v1188
        %v1327 = vpack.c.b16 %v1191, %v1189
        %v1328 = vpack.c.b16 %v1194, %v1192
        %v1329 = vpack.c.b16 %v1195, %v1193
        %v1330 = vpack.c.b16 %v1198, %v1196
        %v1331 = vpack.c.b16 %v1199, %v1197
        %v1332 = vpack.c.b16 %v1202, %v1200
        %v1333 = vpack.c.b16 %v1203, %v1201
        %v1334 = vpack.c.b16 %v1206, %v1204
        %v1335 = vpack.c.b16 %v1207, %v1205
        %v1336 = vpack.c.b16 %v1210, %v1208
        %v1337 = vpack.c.b16 %v1211, %v1209
        %v1338 = vpack.c.b16 %v1214, %v1212
        %v1339 = vpack.c.b16 %v1215, %v1213
        %v1340 = vpack.c.b16 %v1218, %v1216
        %v1341 = vpack.c.b16 %v1219, %v1217
        %v1342 = vpack.c.b16 %v1222, %v1220
        %v1343 = vpack.c.b16 %v1223, %v1221
        %v1344 = vpack.c.b16 %v1226, %v1224
        %v1345 = vpack.c.b16 %v1227, %v1225
        %v1346 = vpack.c.b16 %v1230, %v1228
        %v1347 = vpack.c.b16 %v1231, %v1229
        %v1348 = vpack.c.b16 %v1234, %v1232
        %v1349 = vpack.c.b16 %v1235, %v1233
        %v1350 = vpack.c.b16 %v1238, %v1236
        %v1351 = vpack.c.b16 %v1239, %v1237
        %v1352 = vpack.c.b16 %v1242, %v1240
        %v1353 = vpack.c.b16 %v1243, %v1241
        %v1354 = vpack.c.b16 %v1246, %v1244
        %v1355 = vpack.c.b16 %v1247, %v1245
        %v1356 = vpack.c.b16 %v1250, %v1248
        %v1357 = vpack.c.b16 %v1251, %v1249
        %v1358 = vpack.c.b16 %v1254, %v1252
        %v1359 = vpack.c.b16 %v1255, %v1253
        %v1360 = vpack.c.b16 %v1258, %v1256
        %v1361 = vpack.c.b16 %v1259, %v1257
        %v1362 = vpack.c.b16 %v1262, %v1260
        %v1363 = vpack.c.b16 %v1263, %v1261
        %v1364 = vpack.c.b16 %v1266, %v1264
        %v1365 = vpack.c.b16 %v1267, %v1265
        %v1366 = vpack.c.b16 %v1270, %v1268
        %v1367 = vpack.c.b16 %v1271, %v1269
        %v1465 = vperm.slane %v983, 0
        %v1466 = vperm.slane %v983, 1
        %1469 = vmatpush.bf16.msra.mxu0 %v1286
        %1470 = vmatpush.bf16.msra.mxu0 %v1284
        %1471 = vmatpush.bf16.msra.mxu0 %v1282
        %1472 = vmatpush.bf16.msra.mxu0 %v1280
        %1473 = vmatpush.bf16.msra.mxu0 %v1278
        %1474 = vmatpush.bf16.msra.mxu0 %v1276
        %1475 = vmatpush.bf16.msra.mxu0 %v1274
        %1476 = vmatpush.bf16.msra.mxu0 %v1272
        %1477 = vmatmul.bf16.gmra.mxu0 %v881
        %v1478 = vpop.f32.mrf.mxu0
        %v1479 = vadd.f32 %v1465, %v1478
        %v1480 = vpop.f32.mrf.mxu0
        %1481 = vdwg.mxu0
        %1482 = vmatpush.bf16.msra.mxu0 %v1302
        %1483 = vmatpush.bf16.msra.mxu0 %v1300
        %1484 = vmatpush.bf16.msra.mxu0 %v1298
        %1485 = vmatpush.bf16.msra.mxu0 %v1296
        %1486 = vmatpush.bf16.msra.mxu0 %v1294
        %1487 = vmatpush.bf16.msra.mxu0 %v1292
        %1488 = vmatpush.bf16.msra.mxu0 %v1290
        %1489 = vmatpush.bf16.msra.mxu0 %v1288
        %1490 = vmatmul.bf16.gmra.mxu0 %v882
        %v1491 = vpop.f32.mrf.mxu0
        %v1492 = vadd.f32 %v1479, %v1491
        %v1493 = vpop.f32.mrf.mxu0
        %1494 = vdwg.mxu0
        %1495 = vmatpush.bf16.msra.mxu0 %v1318
        %1496 = vmatpush.bf16.msra.mxu0 %v1316
        %1497 = vmatpush.bf16.msra.mxu0 %v1314
        %1498 = vmatpush.bf16.msra.mxu0 %v1312
        %1499 = vmatpush.bf16.msra.mxu0 %v1310
        %1500 = vmatpush.bf16.msra.mxu0 %v1308
        %1501 = vmatpush.bf16.msra.mxu0 %v1306
        %1502 = vmatpush.bf16.msra.mxu0 %v1304
        %1503 = vmatmul.bf16.gmra.mxu0 %v883
        %v1504 = vpop.f32.mrf.mxu0
        %v1505 = vadd.f32 %v1492, %v1504
        %v1506 = vpop.f32.mrf.mxu0
        %1507 = vdwg.mxu0
        %1508 = vmatpush.bf16.msra.mxu0 %v1334
        %1509 = vmatpush.bf16.msra.mxu0 %v1332
        %1510 = vmatpush.bf16.msra.mxu0 %v1330
        %1511 = vmatpush.bf16.msra.mxu0 %v1328
        %1512 = vmatpush.bf16.msra.mxu0 %v1326
        %1513 = vmatpush.bf16.msra.mxu0 %v1324
        %1514 = vmatpush.bf16.msra.mxu0 %v1322
        %1515 = vmatpush.bf16.msra.mxu0 %v1320
        %1516 = vmatmul.bf16.gmra.mxu0 %v884
        %v1517 = vpop.f32.mrf.mxu0
        %v1518 = vadd.f32 %v1505, %v1517
        %v1519 = vpop.f32.mrf.mxu0
        %1520 = vdwg.mxu0
        %1521 = vmatpush.bf16.msra.mxu0 %v1350
        %1522 = vmatpush.bf16.msra.mxu0 %v1348
        %1523 = vmatpush.bf16.msra.mxu0 %v1346
        %1524 = vmatpush.bf16.msra.mxu0 %v1344
        %1525 = vmatpush.bf16.msra.mxu0 %v1342
        %1526 = vmatpush.bf16.msra.mxu0 %v1340
        %1527 = vmatpush.bf16.msra.mxu0 %v1338
        %1528 = vmatpush.bf16.msra.mxu0 %v1336
        %1529 = vmatmul.bf16.gmra.mxu0 %v885
        %v1530 = vpop.f32.mrf.mxu0
        %v1531 = vadd.f32 %v1518, %v1530
        %v1532 = vpop.f32.mrf.mxu0
        %1533 = vdwg.mxu0
        %1534 = vmatpush.bf16.msra.mxu0 %v1366
        %1535 = vmatpush.bf16.msra.mxu0 %v1364
        %1536 = vmatpush.bf16.msra.mxu0 %v1362
        %1537 = vmatpush.bf16.msra.mxu0 %v1360
        %1538 = vmatpush.bf16.msra.mxu0 %v1358
        %1539 = vmatpush.bf16.msra.mxu0 %v1356
        %1540 = vmatpush.bf16.msra.mxu0 %v1354
        %1541 = vmatpush.bf16.msra.mxu0 %v1352
        %1542 = vmatmul.bf16.gmra.mxu0 %v886
        %v1543 = vpop.f32.mrf.mxu0
        %v1544 = vadd.f32 %v1531, %v1543
        %v1545 = vpop.f32.mrf.mxu0
        %1546 = vdwg.mxu0
        %1547 = vmatpush.bf16.msra.mxu0 %v1287
        %1548 = vmatpush.bf16.msra.mxu0 %v1285
        %1549 = vmatpush.bf16.msra.mxu0 %v1283
        %1550 = vmatpush.bf16.msra.mxu0 %v1281
        %1551 = vmatpush.bf16.msra.mxu0 %v1279
        %1552 = vmatpush.bf16.msra.mxu0 %v1277
        %1553 = vmatpush.bf16.msra.mxu0 %v1275
        %1554 = vmatpush.bf16.msra.mxu0 %v1273
        %1555 = vmatmul.bf16.gmra.mxu0 %v881
        %v1556 = vpop.f32.mrf.mxu0
        %v1557 = vadd.f32 %v1466, %v1556
        %v1558 = vpop.f32.mrf.mxu0
        %1559 = vdwg.mxu0
        %1560 = vmatpush.bf16.msra.mxu0 %v1303
        %1561 = vmatpush.bf16.msra.mxu0 %v1301
        %1562 = vmatpush.bf16.msra.mxu0 %v1299
        %1563 = vmatpush.bf16.msra.mxu0 %v1297
        %1564 = vmatpush.bf16.msra.mxu0 %v1295
        %1565 = vmatpush.bf16.msra.mxu0 %v1293
        %1566 = vmatpush.bf16.msra.mxu0 %v1291
        %1567 = vmatpush.bf16.msra.mxu0 %v1289
        %1568 = vmatmul.bf16.gmra.mxu0 %v882
        %v1569 = vpop.f32.mrf.mxu0
        %v1570 = vadd.f32 %v1557, %v1569
        %v1571 = vpop.f32.mrf.mxu0
        %1572 = vdwg.mxu0
        %1573 = vmatpush.bf16.msra.mxu0 %v1319
        %1574 = vmatpush.bf16.msra.mxu0 %v1317
        %1575 = vmatpush.bf16.msra.mxu0 %v1315
        %1576 = vmatpush.bf16.msra.mxu0 %v1313
        %1577 = vmatpush.bf16.msra.mxu0 %v1311
        %1578 = vmatpush.bf16.msra.mxu0 %v1309
        %1579 = vmatpush.bf16.msra.mxu0 %v1307
        %1580 = vmatpush.bf16.msra.mxu0 %v1305
        %1581 = vmatmul.bf16.gmra.mxu0 %v883
        %v1582 = vpop.f32.mrf.mxu0
        %v1583 = vadd.f32 %v1570, %v1582
        %v1584 = vpop.f32.mrf.mxu0
        %1585 = vdwg.mxu0
        %1586 = vmatpush.bf16.msra.mxu0 %v1335
        %1587 = vmatpush.bf16.msra.mxu0 %v1333
        %1588 = vmatpush.bf16.msra.mxu0 %v1331
        %1589 = vmatpush.bf16.msra.mxu0 %v1329
        %1590 = vmatpush.bf16.msra.mxu0 %v1327
        %1591 = vmatpush.bf16.msra.mxu0 %v1325
        %1592 = vmatpush.bf16.msra.mxu0 %v1323
        %1593 = vmatpush.bf16.msra.mxu0 %v1321
        %1594 = vmatmul.bf16.gmra.mxu0 %v884
        %v1595 = vpop.f32.mrf.mxu0
        %v1596 = vadd.f32 %v1583, %v1595
        %v1597 = vpop.f32.mrf.mxu0
        %1598 = vdwg.mxu0
        %1599 = vmatpush.bf16.msra.mxu0 %v1351
        %1600 = vmatpush.bf16.msra.mxu0 %v1349
        %1601 = vmatpush.bf16.msra.mxu0 %v1347
        %1602 = vmatpush.bf16.msra.mxu0 %v1345
        %1603 = vmatpush.bf16.msra.mxu0 %v1343
        %1604 = vmatpush.bf16.msra.mxu0 %v1341
        %1605 = vmatpush.bf16.msra.mxu0 %v1339
        %1606 = vmatpush.bf16.msra.mxu0 %v1337
        %1607 = vmatmul.bf16.gmra.mxu0 %v885
        %v1608 = vpop.f32.mrf.mxu0
        %v1609 = vadd.f32 %v1596, %v1608
        %v1610 = vpop.f32.mrf.mxu0
        %1611 = vdwg.mxu0
        %1612 = vmatpush.bf16.msra.mxu0 %v1367
        %1613 = vmatpush.bf16.msra.mxu0 %v1365
        %1614 = vmatpush.bf16.msra.mxu0 %v1363
        %1615 = vmatpush.bf16.msra.mxu0 %v1361
        %1616 = vmatpush.bf16.msra.mxu0 %v1359
        %1617 = vmatpush.bf16.msra.mxu0 %v1357
        %1618 = vmatpush.bf16.msra.mxu0 %v1355
        %1619 = vmatpush.bf16.msra.mxu0 %v1353
        %1620 = vmatmul.bf16.gmra.mxu0 %v886
        %v1621 = vpop.f32.mrf.mxu0
        %v1622 = vadd.f32 %v1609, %v1621
        %v1623 = vpop.f32.mrf.mxu0
        %1624 = vdwg.mxu0
        %v1627 = vrot.slane %v1622, 7
        %v1628 = vsel %vm844, %v1544, %v1627
        %vm1630 = vcmp.lt.s32.totalorder %v856, 256
        %vm1631 = vmand %vm857, %vm1630
        %1632 = vst.msk [vmem:[%s250] sm:$0x3] %vm1631, %v1628
      $region48: #{model3_forward.1} parent=39 // pred_fallthru
        _
      %p1633 = scmp.lt.s32.totalorder %s20, 1
      %s1634 = scalar_select %p1633, %s20, 1
      %s1635 = smul.addr %s1634, 2
      %s1636 = scalar_lea.vmem %s5, %s1635
      // Predicated region
      $region49: #{model3_forward.1} parent=39 // pred_check
        %p1637 = pneg %p158
      $region50: #{model3_forward.1} parent=39 // pred_check_branch
        %1639 = sbr.rel (%p1637) target = $region52
      $region51: #{model3_forward.1} parent=39 // pred_region
        _
      $region52: #{model3_forward.1} parent=39 // pred_fallthru
        _
    $region40: #{model3_forward.1} parent=5 // pred_fallthru
      _
    %p1640 = scmp.le.s32.totalorder 2, %s11
    // Predicated region
    $region53: #{model3_forward.1} parent=5 // pred_check
      %p1641 = pneg %p1640
    $region54: #{model3_forward.1} parent=5 // pred_check_branch
      %1643 = sbr.rel (%p1641) target = $region56
    $region55: #{model3_forward.1} parent=5 // pred_region
      %s1644 = ssub.s32 %s11, 2
      // Predicated region
      $region57: #{model3_forward.1} parent=55 // pred_check
        %p1645 = pneg %p164
      $region58: #{model3_forward.1} parent=55 // pred_check_branch
        %1647 = sbr.rel (%p1645) target = $region60
      $region59: #{model3_forward.1} parent=55 // pred_region
        %p1648 = scmp.lt.s32.totalorder %s22, 1
        %s1649 = scalar_select %p1648, %s22, 1
        %s1650 = smul.addr %s1649, 2
        %s1651 = scalar_lea.vmem %s5, %s1650
      $region60: #{model3_forward.1} parent=55 // pred_fallthru
        _
    $region56: #{model3_forward.1} parent=5 // pred_fallthru
      _
  $region6: #{model3_forward.1} parent=0 // loop_footer
    %s15 = sadd.s32 1, %s11
  $region7: #{model3_forward.1} parent=0 // loop_footer_branch
    %10 = sbr.rel target = $region3
  $region8: #{model3_forward.1} parent=0 // loop_exit
    _

</llo_original>
